<compile_context>
chip_gen: v5e
topology: v5e:2x2
jax: 0.10.0
libtpu: 0.0.40
codegen_flags: <defaults>
</compile_context>

<pallas_src>
import math
import functools

import jax
import jax.numpy as jnp
from jax.experimental import pallas as pl
from jax.experimental.pallas import tpu as pltpu


# ---------------------------------------------------------------------------
# Parameter / buffer construction (plain JAX glue, deterministic)
# ---------------------------------------------------------------------------
def make_positional_encoding_table(d_model: int, max_len: int = 5000) -> jnp.ndarray:
    """Builds the (1, max_len, d_model) sinusoidal table exactly like __init__."""
    position = jnp.arange(0, max_len, dtype=jnp.float32)[:, None]            # (max_len, 1)
    div_term = jnp.exp(
        jnp.arange(0, d_model, 2, dtype=jnp.float32) * -(math.log(10000.0) / d_model)
    )                                                                          # (d_model/2,)
    pe = jnp.zeros((max_len, d_model), dtype=jnp.float32)
    pe = pe.at[:, 0::2].set(jnp.sin(position * div_term))
    pe = pe.at[:, 1::2].set(jnp.cos(position * div_term))
    return pe[None, :, :]                                                      # (1, max_len, d_model)


def prepare_pe(pe_table: jnp.ndarray, dtype) -> dict:
    """One-time (outside the hot path) cast + layout prep of the pe buffer.

    Returns a dict with:
      pe        : (1, max_len, d_model) in `dtype`
      pe_folded : (1, max_len*d_model//128, 128) lane-dense view (if it exists)
      pe_padded : (1, max_len, round_up(d_model,128)) zero-padded (if d_model%128)
    """
    _, L, D = pe_table.shape
    pe = pe_table.astype(dtype)
    prepared = {"pe": pe, "d_model": D, "max_len": L}
    n128 = (L * D) // 128
    if n128 > 0:
        prepared["pe_folded"] = (
            pe.reshape(1, L * D)[:, : n128 * 128].reshape(1, n128, 128)
        )
    if D % 128 != 0:
        Dp = ((D + 127) // 128) * 128
        prepared["pe_padded"] = jnp.pad(pe, ((0, 0), (0, 0), (0, Dp - D)))
    return prepared


# ---------------------------------------------------------------------------
# Pallas kernel: y = dropout(x + pe)
# ---------------------------------------------------------------------------
def _pe_dropout_kernel(seed_ref, x_ref, pe_ref, o_ref, *, p: float, training: bool):
    # x/o blocks are (Bb, tr, lanes); pe block is (1, tr, lanes) -> broadcast add.
    if training and p >= 1.0:
        # Degenerate case: everything dropped (avoids threshold wrap / inf scale).
        o_ref[...] = jnp.zeros_like(o_ref)
        return

    y = x_ref[...] + pe_ref[...]

    if training and p > 0.0:
        t = pl.program_id(0)
        b = pl.program_id(1)
        # Decorrelated, deterministic stream per grid step: mix both indices in.
        pltpu.prng_seed(seed_ref[0], t, b)
        bits = pltpu.bitcast(pltpu.prng_random_bits(y.shape), jnp.uint32)
        # drop iff uniform-u32 < p * 2^32  (threshold is Python-static, clamped)
        threshold = jnp.uint32(min(int(p * 4294967296.0), 4294967295))
        keep = bits >= threshold
        scale = jnp.asarray(1.0 / (1.0 - p), dtype=y.dtype)   # inverted dropout
        y = jnp.where(keep, y * scale, jnp.zeros_like(y))
        # TODO(synk): for bf16 on v7x, draw one u32 per 2 elements (16-bit
        # sub-field thresholds) to halve PRNG/VPU work and stay on the HBM roofline.

    o_ref[...] = y.astype(o_ref.dtype)


# ---------------------------------------------------------------------------
# Tiling helpers (generation-aware)
# ---------------------------------------------------------------------------
def _vmem_budget():
    """(per-x-block byte target, vmem_limit_bytes), based on physical VMEM."""
    cap = 64 * 1024 * 1024  # conservative default (v7x per-TC)
    try:
        info = pltpu.get_tpu_info()
        cap = int(getattr(info, "vmem_capacity_bytes", cap)) or cap
    except Exception:
        pass
    if cap >= 128 * 1024 * 1024:          # v5e / v6e
        return 8 * 1024 * 1024, 96 * 1024 * 1024
    return 4 * 1024 * 1024, 48 * 1024 * 1024   # v7x


def _choose_tiles(batch: int, rows: int, lanes: int, itemsize: int, target_bytes: int):
    """Pick (batch_block, row_block) so one x block is ~target_bytes."""
    row_b = lanes * itemsize                                  # one (1,1,lanes) row
    # Fold as much batch into the block as keeps an 8-row slab under target.
    bb = int(max(1, min(batch, target_bytes // (8 * row_b))))
    # Rows per block: largest multiple of 8 keeping the x block under target.
    tr = int((target_bytes // (bb * row_b)) // 8 * 8)
    tr = max(8, tr)
    if tr >= rows:
        tr = rows            # single row-tile; full-extent blocks are always legal
    return bb, tr


# ---------------------------------------------------------------------------
# Forward wrapper
# ---------------------------------------------------------------------------
def positional_encoding_forward(x, pe_prepared, *, p: float = 0.1,
                                training: bool = False, seed: int = 0):
    """x: (B, S, D).  Returns dropout(x + pe[:, :S, :]) with PyTorch semantics."""
    if not isinstance(pe_prepared, dict):          # accept a raw table for convenience
        pe_prepared = prepare_pe(pe_prepared, x.dtype)

    B, S, D = x.shape
    assert D == pe_prepared["d_model"], "d_model mismatch with pe table"
    assert S <= pe_prepared["max_len"], "sequence longer than max_len"

    # ---- pick a lane-dense layout ------------------------------------------
    layout = None
    if D % 128 == 0:
        layout = "plain"
        rows, lanes = S, D
        x3, pe3 = x, pe_prepared["pe"]                       # full table; index_map slices
    elif (S * D) % 128 == 0 and "pe_folded" in pe_prepared and \
            (S * D) // 128 <= pe_prepared["pe_folded"].shape[1]:
        layout = "fold"
        rows, lanes = (S * D) // 128, 128
        x3 = x.reshape(B, rows, lanes)                       # contiguous -> free reshape
        pe3 = pe_prepared["pe_folded"]
    else:
        layout = "pad"                                       # keep stores unmasked
        Dp = ((D + 127) // 128) * 128
        rows, lanes = S, Dp
        x3 = jnp.pad(x, ((0, 0), (0, 0), (0, Dp - D)))
        pe3 = pe_prepared["pe_padded"]

    itemsize = jnp.dtype(x.dtype).itemsize
    target_bytes, vmem_limit = _vmem_budget()
    bb, tr = _choose_tiles(B, rows, lanes, itemsize, target_bytes)

    # When a single full-extent row tile is used and rows is not 8-aligned, the
    # (8,128) rule only allows it as a *full array* extent -> trim pe to match.
    if tr == rows and rows % 8 != 0 and pe3.shape[1] != rows:
        pe3 = pe3[:, :rows, :]

    grid = (pl.cdiv(rows, tr), pl.cdiv(B, bb))               # row-tile OUTER, batch INNER

    seed_arr = jnp.array([seed], dtype=jnp.int32)
    kernel = functools.partial(_pe_dropout_kernel, p=float(p), training=bool(training))

    grid_spec = pltpu.PrefetchScalarGridSpec(
        num_scalar_prefetch=1,                               # seed -> SMEM
        grid=grid,
        in_specs=[
            # x: one (batch-block, row-tile) block per step
            pl.BlockSpec((bb, tr, lanes), lambda t, b, seed: (b, t, 0)),
            # pe: broadcast over batch; block index constant across inner b loop
            # => DMA'd once per row-tile.
            pl.BlockSpec((1, tr, lanes), lambda t, b, seed: (0, t, 0)),
        ],
        out_specs=pl.BlockSpec((bb, tr, lanes), lambda t, b, seed: (b, t, 0)),
    )

    out = pl.pallas_call(
        kernel,
        out_shape=jax.ShapeDtypeStruct((B, rows, lanes), x.dtype),
        grid_spec=grid_spec,
        compiler_params=pltpu.CompilerParams(
            # Row-tile axis parallel (v7x 2-TC split lands there); batch-block
            # axis arbitrary so per-core pe reuse across the inner loop holds.
            dimension_semantics=("parallel", "arbitrary"),
            vmem_limit_bytes=vmem_limit,
        ),
    )(seed_arr, x3, pe3)

    if layout == "plain":
        return out
    if layout == "fold":
        return out.reshape(B, S, D)
    return out[:, :, :D]                                     # "pad": drop lane padding


# ---------------------------------------------------------------------------
# Demo / self-check
# ---------------------------------------------------------------------------
if __name__ == "__main__":
    B, S, D = 2, 8, 32
    max_len, p = 64, 0.1

    key = jax.random.PRNGKey(0)
    x = jax.random.normal(key, (B, S, D), dtype=jnp.float32)

    pe_table = make_positional_encoding_table(D, max_len)
    pe_prepared = prepare_pe(pe_table, x.dtype)              # one-time prep (hot path clean)
    ref = x + pe_table[:, :S, :]

    # --- eval mode (dropout == identity): must match reference exactly -------
    y_eval = positional_encoding_forward(x, pe_prepared, p=p, training=False)
    y_eval = jax.block_until_ready(y_eval)
    assert y_eval.shape == (B, S, D)
    assert jnp.allclose(y_eval, ref, atol=1e-6, rtol=1e-6), "eval-mode mismatch"

    # --- training mode (in-kernel HW-PRNG dropout, inverted scaling) ---------
    # pltpu.prng_* only lowers on real TPU hardware, so gate on the backend.
    if jax.devices()[0].platform == "tpu":
        y_train = positional_encoding_forward(x, pe_prepared, p=p, training=True, seed=1234)
        y_train = jax.block_until_ready(y_train)
        # Kept elements equal ref/(1-p); dropped elements are exactly 0.
        # (Exact-zero detection could misclassify an element where x+pe == 0;
        #  vanishingly unlikely with random normal inputs.)
        kept = y_train != 0.0
        assert jnp.allclose(jnp.where(kept, y_train, 0.0),
                            jnp.where(kept, ref / (1.0 - p), 0.0),
                            atol=1e-5, rtol=1e-5), "train-mode kept-element mismatch"

    print("KERNEL_OK")
</pallas_src>

<mosaic_0001>
module attributes {stable_mosaic.version = 11 : i64} {
  func.func @_pe_dropout_kernel(%arg0: i32, %arg1: i32, %arg2: memref<1xi32, #tpu.memory_space<smem>>, %arg3: memref<2x2x128xf32, #tpu.memory_space<vmem>>, %arg4: memref<1x2x128xf32, #tpu.memory_space<vmem>>, %arg5: memref<2x2x128xf32, #tpu.memory_space<vmem>>) attributes {dimension_semantics = [#tpu.dimension_semantics<parallel>, #tpu.dimension_semantics<arbitrary>], iteration_bounds = array<i64: 1, 1>, scalar_prefetch = 1 : i64, scratch_operands = 0 : i64, tpu.core_type = #tpu.core_type<tc>, window_params = [{transform_indices = @transform_0, window_bounds = array<i64: 2, 2, 128>}, {transform_indices = @transform_1, window_bounds = array<i64: 1, 2, 128>}, {transform_indices = @transform_2, window_bounds = array<i64: 2, 2, 128>}]} {
    %c0 = arith.constant 0 : index
    %c0_0 = arith.constant 0 : index
    %c0_1 = arith.constant 0 : index
    %0 = vector.load %arg3[%c0, %c0_0, %c0_1] : memref<2x2x128xf32, #tpu.memory_space<vmem>>, vector<2x2x128xf32>
    %c0_2 = arith.constant 0 : index
    %c0_3 = arith.constant 0 : index
    %c0_4 = arith.constant 0 : index
    %1 = vector.load %arg4[%c0_2, %c0_3, %c0_4] : memref<1x2x128xf32, #tpu.memory_space<vmem>>, vector<1x2x128xf32>
    %2 = vector.broadcast %1 : vector<1x2x128xf32> to vector<2x2x128xf32>
    %3 = arith.addf %0, %2 : vector<2x2x128xf32>
    %c0_5 = arith.constant 0 : index
    %c0_6 = arith.constant 0 : index
    %c0_7 = arith.constant 0 : index
    %4 = vector.load %arg5[%c0_5, %c0_6, %c0_7] : memref<2x2x128xf32, #tpu.memory_space<vmem>>, vector<2x2x128xf32>
    tpu.vector_store %arg5[%c0_5, %c0_6, %c0_7], %3 {strides = array<i32>} : memref<2x2x128xf32, #tpu.memory_space<vmem>>, vector<2x2x128xf32>,
    return
  }
  func.func @transform_0(%arg0: i32, %arg1: i32, %arg2: memref<1xi32, #tpu.memory_space<smem>>) -> (i32, i32, i32) {
    %c0_i32 = arith.constant 0 : i32
    %c0_i32_0 = arith.constant 0 : i32
    return %arg1, %arg0, %c0_i32 : i32, i32, i32
  }
  func.func @transform_1(%arg0: i32, %arg1: i32, %arg2: memref<1xi32, #tpu.memory_space<smem>>) -> (i32, i32, i32) {
    %c0_i32 = arith.constant 0 : i32
    %c0_i32_0 = arith.constant 0 : i32
    %c0_i32_1 = arith.constant 0 : i32
    return %c0_i32, %arg0, %c0_i32_0 : i32, i32, i32
  }
  func.func @transform_2(%arg0: i32, %arg1: i32, %arg2: memref<1xi32, #tpu.memory_space<smem>>) -> (i32, i32, i32) {
    %c0_i32 = arith.constant 0 : i32
    %c0_i32_0 = arith.constant 0 : i32
    return %arg1, %arg0, %c0_i32 : i32, i32, i32
  }
}

</mosaic_0001>

<llo_original>
// kernel: tpu_custom_call.1
$region0: #{tpu_custom_call.1}
  #allocation0 [shape = 'u32[]', space=smem, size = 0x4, offset = 0x4, fixed_abs, tag = 'smem constant byte address 0x4 - core index']
  #allocation1 [shape = 'u32[72,128]{1,0:T(1,128)}', space=vmem, size = 0x9000, scoped, tag = 'internal scratch']
  #allocation2 [shape = 's32[1]{0}', space=sflag, size = 0x4, scoped, tag = 'scoped memory for tpu_custom_call.1']
  #allocation3 [shape = 's32[1]{0:T(128)S(6)}', space=smem, size = 0x200, scoped, tag = 'prefetched SMEM operand 0']
  %s0 = inlined_call_operand.<no memory space> [shape: s32[1], index: 0, kind: input, shape index: {}]
  %s1 = inlined_call_operand.hbm [shape: f32[2,2,128], index: 1, kind: input, shape index: {}]
  %s2 = inlined_call_operand.vmem [shape: f32[1,2,128], index: 2, kind: input, shape index: {}]
  %s3 = inlined_call_operand.hbm [shape: f32[2,2,128], index: 3, kind: output, shape index: {}]
  %s4 = sld [smem:[#allocation0]]
  $region22: #{tpu_custom_call.1} parent=0
    _
  %s6 = ssub.s32 1, %s4
  %s7 = scalar_select 0, %s6, %s4
  %8 = sst [smem:[#allocation3]] %s0
  $region1: #{tpu_custom_call.1} parent=0
    #allocation4 [shape = 'u8[2048]{0}', space=vmem, size = 0x800, scoped, tag = 'input window, operand 1, single buffered']
    #allocation5 [shape = 's32[1]{0}', space=sflag, size = 0x4, scoped, tag = 'scoped memory for tpu_custom_call.1']
    #allocation6 [shape = 's32[1]{0}', space=sflag, size = 0x4, scoped, tag = 'scoped memory for tpu_custom_call.1']
    #allocation7 [shape = 'u8[2048]{0}', space=vmem, size = 0x800, scoped, tag = 'output window, operand 0, single buffered']
    %9 = vsyncpa [#allocation5], 0
    %10 = vsyncpa [#allocation6], 0
    // Predicated region
    $region2: #{tpu_custom_call.1} parent=1 // pred_check
      _
    $region3: #{tpu_custom_call.1} parent=1 // pred_check_branch
      %12 = sbr.rel (0) target = $region5
    $region4: #{tpu_custom_call.1} parent=1 // pred_region
      %14 = vsyncadd [#allocation5], 0
      %s15 = sshll.u32 %s1, 4
      %s16 = int_to_ptr.hbm [resolvable:$true] %s15
      %s17 = sshll.u32 [#allocation4], 4
      %s18 = int_to_ptr.vmem [resolvable:$true] %s17
      %23 = dma.hbm_to_vmem [thread:$0]  %s16, 64, %s18, [#allocation5], 32, 32, 2
    $region5: #{tpu_custom_call.1} parent=1 // pred_fallthru
      _
    // Predicated region
    $region6: #{tpu_custom_call.1} parent=1 // pred_check
      _
    $region7: #{tpu_custom_call.1} parent=1 // pred_check_branch
      %25 = sbr.rel (0) target = $region9
    $region8: #{tpu_custom_call.1} parent=1 // pred_region
      _
    $region9: #{tpu_custom_call.1} parent=1 // pred_fallthru
      _
    // Predicated region
    $region10: #{tpu_custom_call.1} parent=1 // pred_check
      _
    $region11: #{tpu_custom_call.1} parent=1 // pred_check_branch
      %27 = sbr.rel (0) target = $region13
    $region12: #{tpu_custom_call.1} parent=1 // pred_region
      %29 = dma.done [#allocation5], 64
    $region13: #{tpu_custom_call.1} parent=1 // pred_fallthru
      _
    %v30 = vld [vmem:[#allocation4] sm:$0x3]
    %v31 = vld [vmem:[#allocation4 + $0x2] sm:$0x3]
    %v32 = vld [vmem:[%s2] sm:$0x3]
    %v33 = vadd.f32 %v30, %v32
    %v34 = vadd.f32 %v31, %v32
    %35 = vst [vmem:[#allocation7] sm:$0x3] %v33
    %36 = vst [vmem:[#allocation7 + $0x2] sm:$0x3] %v34
    // Predicated region
    $region14: #{tpu_custom_call.1} parent=1 // pred_check
      _
    $region15: #{tpu_custom_call.1} parent=1 // pred_check_branch
      %38 = sbr.rel (0) target = $region17
    $region16: #{tpu_custom_call.1} parent=1 // pred_region
      %40 = vsyncadd [#allocation6], 0
      %s41 = sshll.u32 [#allocation7], 4
      %s42 = int_to_ptr.vmem [resolvable:$true] %s41
      %s43 = sshll.u32 %s3, 4
      %s44 = int_to_ptr.hbm [resolvable:$true] %s43
      %49 = dma.vmem_to_hbm [thread:$0]  %s42, 64, %s44, [#allocation6], 32, 32, 2
    $region17: #{tpu_custom_call.1} parent=1 // pred_fallthru
      _
    // Predicated region
    $region18: #{tpu_custom_call.1} parent=1 // pred_check
      _
    $region19: #{tpu_custom_call.1} parent=1 // pred_check_branch
      %51 = sbr.rel (0) target = $region21
    $region20: #{tpu_custom_call.1} parent=1 // pred_region
      %53 = dma.done [#allocation6], 64
    $region21: #{tpu_custom_call.1} parent=1 // pred_fallthru
      _
    %54 = vsyncpa [#allocation5], 1
    %55 = vsyncpa [#allocation6], 1

</llo_original>
